<compile_context>
chip_gen: v6e
topology: v6e:2x2x1
jax: 0.10.0
libtpu: 0.0.40
codegen_flags: <defaults>
</compile_context>

<pallas_src>
import math
from functools import partial

import jax
import jax.numpy as jnp
from jax.experimental import pallas as pl
from jax.experimental.pallas import tpu as pltpu


# ----------------------------- kernel -----------------------------
def cae_kernel(xa_ref,
               wemb, bemb,
               ef0w, ef0b, ef1w, ef1b, elw, elb,
               df0wz, df0wx, df0b, df1w, df1b, dlw, dlb,
               out_ref):
    xa = xa_ref[...]                               # (bm, obs_sz + act_sz) = cat(obs, act)

    def dot(x, w_ref):
        return jnp.dot(x, w_ref[...], preferred_element_type=jnp.float32)

    # ----- encoder (Mlp_embedding) -----
    # block-diagonal W_emb: relu(xa @ W_emb + b_emb) == cat(relu(obs@E1+b1), relu(act@E2+b2))
    h = jnp.maximum(dot(xa, wemb) + bemb[...], 0.0)
    h = jnp.maximum(dot(h, ef0w) + ef0b[...], 0.0)
    h = jnp.maximum(dot(h, ef1w) + ef1b[...], 0.0)
    z = dot(h, elw) + elb[...]                     # latent (identity output activation)

    # ----- decoder (Mlp) -----
    # cat(z, obs) @ Wdec0 == z @ Wdec0[:latent] + xa @ df0wx
    # (df0wx holds Wdec0[latent:] in its obs rows and zeros in its act rows)
    h = jnp.maximum(dot(z, df0wz) + dot(xa, df0wx) + df0b[...], 0.0)
    h = jnp.maximum(dot(h, df1w) + df1b[...], 0.0)
    out_ref[...] = jnp.tanh(dot(h, dlw) + dlb[...])   # tanh on the EUP (otherwise-idle slot)


# ------------------- one-time parameter preprocessing -------------------
def prepare_params(params, obs_sz, act_sz):
    """Hoisted weight preprocessing. Call ONCE per parameter set, not per forward."""
    (e1w, e1b, e2w, e2b,
     ef0w, ef0b, ef1w, ef1b, elw, elb,
     df0w, df0b, df1w, df1b, dlw, dlb) = params
    emb0, emb1 = e1w.shape[1], e2w.shape[1]
    latent = elw.shape[1]
    in_sz = obs_sz + act_sz

    # Block-diagonal embedding weight: xa @ wemb == cat(obs @ E1, act @ E2).
    wemb = jnp.zeros((in_sz, emb0 + emb1), jnp.float32)
    wemb = wemb.at[:obs_sz, :emb0].set(e1w).at[obs_sz:, emb0:].set(e2w)
    bemb = jnp.concatenate([e1b, e2b], axis=1)

    # Decoder first layer: split the cat(z, obs) weight; the obs part lives in the
    # obs rows of a (in_sz, h0) matrix so it can be applied directly to xa.
    df0wz = df0w[:latent, :]
    df0wx = jnp.zeros((in_sz, df0w.shape[1]), jnp.float32).at[:obs_sz, :].set(df0w[latent:, :])

    return (wemb, bemb, ef0w, ef0b, ef1w, ef1b, elw, elb,
            df0wz, df0wx, df0b, df1w, df1b, dlw, dlb)


# ----------------------------- forward wrapper -----------------------------
def _round_up(x, m):
    return ((x + m - 1) // m) * m


def _pick_bm(batch):
    # Large tiles amortize the ~0.35 us per-grid-step pipeline overhead; for
    # moderate batches keep >= 2 grid steps so v7x's two TensorCores both get work.
    if batch >= 2048:
        return 1024
    if batch >= 1024:
        return 512
    if batch <= 8:
        return 8
    return max(8, _round_up(pl.cdiv(batch, 2), 8))


@partial(jax.jit, static_argnames=("bm",))
def conditional_ae_forward(obs, act, prepared, bm=None):
    """obs: (B, obs_sz), act: (B, act_sz), prepared: output of prepare_params()."""
    (wemb, bemb, ef0w, ef0b, ef1w, ef1b, elw, elb,
     df0wz, df0wx, df0b, df1w, df1b, dlw, dlb) = prepared

    batch, obs_sz = obs.shape
    act_sz = act.shape[1]
    in_sz = obs_sz + act_sz

    if bm is None:
        bm = _pick_bm(batch)
    bpad = _round_up(batch, bm)

    # Single fused input (concat done once here; the kernel never concatenates).
    xa = jnp.concatenate([obs, act], axis=-1)
    if bpad != batch:
        xa = jnp.pad(xa, ((0, bpad - batch), (0, 0)))

    weights = (wemb, bemb, ef0w, ef0b, ef1w, ef1b, elw, elb,
               df0wz, df0wx, df0b, df1w, df1b, dlw, dlb)

    def const_spec(w):
        # Constant index_map: the block never rotates -> stays VMEM-resident.
        return pl.BlockSpec(w.shape, lambda i: (0, 0))

    out = pl.pallas_call(
        cae_kernel,
        out_shape=jax.ShapeDtypeStruct((bpad, act_sz), jnp.float32),
        grid=(bpad // bm,),
        in_specs=[pl.BlockSpec((bm, in_sz), lambda i: (i, 0))]
                 + [const_spec(w) for w in weights],
        out_specs=pl.BlockSpec((bm, act_sz), lambda i: (i, 0)),
        compiler_params=pltpu.CompilerParams(
            dimension_semantics=("parallel",),
            vmem_limit_bytes=32 * 1024 * 1024),   # headroom; fits every TPU generation
    )(xa, *weights)

    return out[:batch] if bpad != batch else out


# ---------------- deterministic parameter construction ----------------
def fanin_linear(key, in_dim, out_dim, b_init_value=0.1):
    """Mimics ptu.fanin_init weight + constant bias. Weight stored (in, out)."""
    bound = 1.0 / math.sqrt(in_dim)
    w = jax.random.uniform(key, (in_dim, out_dim), jnp.float32, -bound, bound)
    b = jnp.full((1, out_dim), b_init_value, jnp.float32)
    return w, b


def last_linear(key, in_dim, out_dim, init_w=0.003):
    kw, kb = jax.random.split(key)
    w = jax.random.uniform(kw, (in_dim, out_dim), jnp.float32, -init_w, init_w)
    b = jax.random.uniform(kb, (1, out_dim), jnp.float32, -init_w, init_w)
    return w, b


def build_params(key, obs_sz, act_sz, embedding_sizes, hidden_sizes, latent_size):
    keys = jax.random.split(key, 8)
    # encoder: embeddings
    e1w, e1b = fanin_linear(keys[0], obs_sz, embedding_sizes[0])
    e2w, e2b = fanin_linear(keys[1], act_sz, embedding_sizes[1])
    # encoder hidden fcs
    in_sz = embedding_sizes[0] + embedding_sizes[1]
    ef0w, ef0b = fanin_linear(keys[2], in_sz, hidden_sizes[0])
    ef1w, ef1b = fanin_linear(keys[3], hidden_sizes[0], hidden_sizes[1])
    # encoder last fc -> latent
    elw, elb = last_linear(keys[4], hidden_sizes[1], latent_size)
    # decoder: input = latent + obs
    dec_in = latent_size + obs_sz
    df0w, df0b = fanin_linear(keys[5], dec_in, hidden_sizes[0])
    df1w, df1b = fanin_linear(keys[6], hidden_sizes[0], hidden_sizes[1])
    dlw, dlb = last_linear(keys[7], hidden_sizes[1], act_sz)
    return [e1w, e1b, e2w, e2b,
            ef0w, ef0b, ef1w, ef1b, elw, elb,
            df0w, df0b, df1w, df1b, dlw, dlb]


# ---------------- pure-JAX reference (same math, with the concats) ----------------
def reference_forward(obs, act, params):
    (e1w, e1b, e2w, e2b,
     ef0w, ef0b, ef1w, ef1b, elw, elb,
     df0w, df0b, df1w, df1b, dlw, dlb) = params
    hp = jax.lax.Precision.HIGHEST
    mm = lambda x, w: jnp.dot(x, w, precision=hp)
    h1 = jax.nn.relu(mm(obs, e1w) + e1b)
    h2 = jax.nn.relu(mm(act, e2w) + e2b)
    h = jnp.concatenate([h1, h2], axis=-1)
    h = jax.nn.relu(mm(h, ef0w) + ef0b)
    h = jax.nn.relu(mm(h, ef1w) + ef1b)
    z = mm(h, elw) + elb
    zc = jnp.concatenate([z, obs], axis=-1)
    h = jax.nn.relu(mm(zc, df0w) + df0b)
    h = jax.nn.relu(mm(h, df1w) + df1b)
    return jnp.tanh(mm(h, dlw) + dlb)


if __name__ == "__main__":
    # small shapes consistent with the module
    obs_sz, act_sz = 12, 6
    embedding_sizes = (16, 16)
    hidden_sizes = (32, 32)
    latent_size = 8

    key = jax.random.PRNGKey(0)
    k_obs, k_act, k_params, k_obs2, k_act2 = jax.random.split(key, 5)

    params = build_params(k_params, obs_sz, act_sz,
                          embedding_sizes, hidden_sizes, latent_size)
    prepared = prepare_params(params, obs_sz, act_sz)   # one-time preprocessing

    # small single-tile batch
    batch = 8
    obs = jax.random.normal(k_obs, (batch, obs_sz), jnp.float32)
    act = jax.random.normal(k_act, (batch, act_sz), jnp.float32)

    out = conditional_ae_forward(obs, act, prepared)
    jax.block_until_ready(out)
    assert out.shape == (batch, act_sz)
    assert bool(jnp.all(jnp.isfinite(out)))

    ref = reference_forward(obs, act, params)
    # Tolerance covers possible bf16-pass MXU rounding differences between the
    # Mosaic-kernel and XLA-reference f32 matmul defaults (kernel accumulates in f32).
    assert bool(jnp.allclose(out, ref, atol=5e-4, rtol=1e-3))

    # ragged multi-tile batch (exercises row padding + a 2-step "parallel" grid)
    batch2 = 300
    obs2 = jax.random.normal(k_obs2, (batch2, obs_sz), jnp.float32)
    act2 = jax.random.normal(k_act2, (batch2, act_sz), jnp.float32)
    out2 = conditional_ae_forward(obs2, act2, prepared)
    jax.block_until_ready(out2)
    assert out2.shape == (batch2, act_sz)
    ref2 = reference_forward(obs2, act2, params)
    assert bool(jnp.allclose(out2, ref2, atol=5e-4, rtol=1e-3))

    print("KERNEL_OK")
</pallas_src>

<mosaic_0001>
module attributes {stable_mosaic.version = 11 : i64} {
  func.func @cae_kernel(%arg0: i32, %arg1: memref<8x18xf32, #tpu.memory_space<vmem>>, %arg2: memref<18x32xf32, #tpu.memory_space<vmem>>, %arg3: memref<1x32xf32, #tpu.memory_space<vmem>>, %arg4: memref<32x32xf32, #tpu.memory_space<vmem>>, %arg5: memref<1x32xf32, #tpu.memory_space<vmem>>, %arg6: memref<32x32xf32, #tpu.memory_space<vmem>>, %arg7: memref<1x32xf32, #tpu.memory_space<vmem>>, %arg8: memref<32x8xf32, #tpu.memory_space<vmem>>, %arg9: memref<1x8xf32, #tpu.memory_space<vmem>>, %arg10: memref<8x32xf32, #tpu.memory_space<vmem>>, %arg11: memref<18x32xf32, #tpu.memory_space<vmem>>, %arg12: memref<1x32xf32, #tpu.memory_space<vmem>>, %arg13: memref<32x32xf32, #tpu.memory_space<vmem>>, %arg14: memref<1x32xf32, #tpu.memory_space<vmem>>, %arg15: memref<32x6xf32, #tpu.memory_space<vmem>>, %arg16: memref<1x6xf32, #tpu.memory_space<vmem>>, %arg17: memref<8x6xf32, #tpu.memory_space<vmem>>) attributes {dimension_semantics = [#tpu.dimension_semantics<parallel>], iteration_bounds = array<i64: 1>, scalar_prefetch = 0 : i64, scratch_operands = 0 : i64, tpu.core_type = #tpu.core_type<tc>, window_params = [{transform_indices = @transform_0, window_bounds = array<i64: 8, 18>}, {pipeline_mode = #tpu.pipeline_mode<synchronous>, transform_indices = @transform_1, window_bounds = array<i64: 18, 32>}, {pipeline_mode = #tpu.pipeline_mode<synchronous>, transform_indices = @transform_2, window_bounds = array<i64: 1, 32>}, {pipeline_mode = #tpu.pipeline_mode<synchronous>, transform_indices = @transform_3, window_bounds = array<i64: 32, 32>}, {pipeline_mode = #tpu.pipeline_mode<synchronous>, transform_indices = @transform_4, window_bounds = array<i64: 1, 32>}, {pipeline_mode = #tpu.pipeline_mode<synchronous>, transform_indices = @transform_5, window_bounds = array<i64: 32, 32>}, {pipeline_mode = #tpu.pipeline_mode<synchronous>, transform_indices = @transform_6, window_bounds = array<i64: 1, 32>}, {pipeline_mode = #tpu.pipeline_mode<synchronous>, transform_indices = @transform_7, window_bounds = array<i64: 32, 8>}, {pipeline_mode = #tpu.pipeline_mode<synchronous>, transform_indices = @transform_8, window_bounds = array<i64: 1, 8>}, {pipeline_mode = #tpu.pipeline_mode<synchronous>, transform_indices = @transform_9, window_bounds = array<i64: 8, 32>}, {pipeline_mode = #tpu.pipeline_mode<synchronous>, transform_indices = @transform_10, window_bounds = array<i64: 18, 32>}, {pipeline_mode = #tpu.pipeline_mode<synchronous>, transform_indices = @transform_11, window_bounds = array<i64: 1, 32>}, {pipeline_mode = #tpu.pipeline_mode<synchronous>, transform_indices = @transform_12, window_bounds = array<i64: 32, 32>}, {pipeline_mode = #tpu.pipeline_mode<synchronous>, transform_indices = @transform_13, window_bounds = array<i64: 1, 32>}, {pipeline_mode = #tpu.pipeline_mode<synchronous>, transform_indices = @transform_14, window_bounds = array<i64: 32, 6>}, {pipeline_mode = #tpu.pipeline_mode<synchronous>, transform_indices = @transform_15, window_bounds = array<i64: 1, 6>}, {transform_indices = @transform_16, window_bounds = array<i64: 8, 6>}]} {
    %c0 = arith.constant 0 : index
    %c0_0 = arith.constant 0 : index
    %0 = vector.load %arg1[%c0, %c0_0] : memref<8x18xf32, #tpu.memory_space<vmem>>, vector<8x18xf32>
    %c0_1 = arith.constant 0 : index
    %c0_2 = arith.constant 0 : index
    %1 = vector.load %arg2[%c0_1, %c0_2] : memref<18x32xf32, #tpu.memory_space<vmem>>, vector<18x32xf32>
    %cst = arith.constant dense<0.000000e+00> : vector<8x32xf32>
    %2 = tpu.matmul %0, %1, %cst {dimension_numbers = #tpu.dot_dimension_numbers<[1], [0], [0], [1], [0, 0, 1, 1], [], []>} : vector<8x18xf32>, vector<18x32xf32>, vector<8x32xf32> -> vector<8x32xf32>
    %c0_3 = arith.constant 0 : index
    %c0_4 = arith.constant 0 : index
    %3 = vector.load %arg3[%c0_3, %c0_4] : memref<1x32xf32, #tpu.memory_space<vmem>>, vector<1x32xf32>
    %4 = vector.broadcast %3 : vector<1x32xf32> to vector<8x32xf32>
    %5 = arith.addf %2, %4 : vector<8x32xf32>
    %cst_5 = arith.constant 0.000000e+00 : f32
    %6 = vector.broadcast %cst_5 : f32 to vector<8x32xf32>
    %7 = arith.maximumf %5, %6 : vector<8x32xf32>
    %c0_6 = arith.constant 0 : index
    %c0_7 = arith.constant 0 : index
    %8 = vector.load %arg4[%c0_6, %c0_7] : memref<32x32xf32, #tpu.memory_space<vmem>>, vector<32x32xf32>
    %cst_8 = arith.constant dense<0.000000e+00> : vector<8x32xf32>
    %9 = tpu.matmul %7, %8, %cst_8 {dimension_numbers = #tpu.dot_dimension_numbers<[1], [0], [0], [1], [0, 0, 1, 1], [], []>} : vector<8x32xf32>, vector<32x32xf32>, vector<8x32xf32> -> vector<8x32xf32>
    %c0_9 = arith.constant 0 : index
    %c0_10 = arith.constant 0 : index
    %10 = vector.load %arg5[%c0_9, %c0_10] : memref<1x32xf32, #tpu.memory_space<vmem>>, vector<1x32xf32>
    %11 = vector.broadcast %10 : vector<1x32xf32> to vector<8x32xf32>
    %12 = arith.addf %9, %11 : vector<8x32xf32>
    %cst_11 = arith.constant 0.000000e+00 : f32
    %13 = vector.broadcast %cst_11 : f32 to vector<8x32xf32>
    %14 = arith.maximumf %12, %13 : vector<8x32xf32>
    %c0_12 = arith.constant 0 : index
    %c0_13 = arith.constant 0 : index
    %15 = vector.load %arg6[%c0_12, %c0_13] : memref<32x32xf32, #tpu.memory_space<vmem>>, vector<32x32xf32>
    %cst_14 = arith.constant dense<0.000000e+00> : vector<8x32xf32>
    %16 = tpu.matmul %14, %15, %cst_14 {dimension_numbers = #tpu.dot_dimension_numbers<[1], [0], [0], [1], [0, 0, 1, 1], [], []>} : vector<8x32xf32>, vector<32x32xf32>, vector<8x32xf32> -> vector<8x32xf32>
    %c0_15 = arith.constant 0 : index
    %c0_16 = arith.constant 0 : index
    %17 = vector.load %arg7[%c0_15, %c0_16] : memref<1x32xf32, #tpu.memory_space<vmem>>, vector<1x32xf32>
    %18 = vector.broadcast %17 : vector<1x32xf32> to vector<8x32xf32>
    %19 = arith.addf %16, %18 : vector<8x32xf32>
    %cst_17 = arith.constant 0.000000e+00 : f32
    %20 = vector.broadcast %cst_17 : f32 to vector<8x32xf32>
    %21 = arith.maximumf %19, %20 : vector<8x32xf32>
    %c0_18 = arith.constant 0 : index
    %c0_19 = arith.constant 0 : index
    %22 = vector.load %arg8[%c0_18, %c0_19] : memref<32x8xf32, #tpu.memory_space<vmem>>, vector<32x8xf32>
    %cst_20 = arith.constant dense<0.000000e+00> : vector<8x8xf32>
    %23 = tpu.matmul %21, %22, %cst_20 {dimension_numbers = #tpu.dot_dimension_numbers<[1], [0], [0], [1], [0, 0, 1, 1], [], []>} : vector<8x32xf32>, vector<32x8xf32>, vector<8x8xf32> -> vector<8x8xf32>
    %c0_21 = arith.constant 0 : index
    %c0_22 = arith.constant 0 : index
    %24 = vector.load %arg9[%c0_21, %c0_22] : memref<1x8xf32, #tpu.memory_space<vmem>>, vector<1x8xf32>
    %25 = vector.broadcast %24 : vector<1x8xf32> to vector<8x8xf32>
    %26 = arith.addf %23, %25 : vector<8x8xf32>
    %c0_23 = arith.constant 0 : index
    %c0_24 = arith.constant 0 : index
    %27 = vector.load %arg10[%c0_23, %c0_24] : memref<8x32xf32, #tpu.memory_space<vmem>>, vector<8x32xf32>
    %cst_25 = arith.constant dense<0.000000e+00> : vector<8x32xf32>
    %28 = tpu.matmul %26, %27, %cst_25 {dimension_numbers = #tpu.dot_dimension_numbers<[1], [0], [0], [1], [0, 0, 1, 1], [], []>} : vector<8x8xf32>, vector<8x32xf32>, vector<8x32xf32> -> vector<8x32xf32>
    %c0_26 = arith.constant 0 : index
    %c0_27 = arith.constant 0 : index
    %29 = vector.load %arg11[%c0_26, %c0_27] : memref<18x32xf32, #tpu.memory_space<vmem>>, vector<18x32xf32>
    %cst_28 = arith.constant dense<0.000000e+00> : vector<8x32xf32>
    %30 = tpu.matmul %0, %29, %cst_28 {dimension_numbers = #tpu.dot_dimension_numbers<[1], [0], [0], [1], [0, 0, 1, 1], [], []>} : vector<8x18xf32>, vector<18x32xf32>, vector<8x32xf32> -> vector<8x32xf32>
    %31 = arith.addf %28, %30 : vector<8x32xf32>
    %c0_29 = arith.constant 0 : index
    %c0_30 = arith.constant 0 : index
    %32 = vector.load %arg12[%c0_29, %c0_30] : memref<1x32xf32, #tpu.memory_space<vmem>>, vector<1x32xf32>
    %33 = vector.broadcast %32 : vector<1x32xf32> to vector<8x32xf32>
    %34 = arith.addf %31, %33 : vector<8x32xf32>
    %cst_31 = arith.constant 0.000000e+00 : f32
    %35 = vector.broadcast %cst_31 : f32 to vector<8x32xf32>
    %36 = arith.maximumf %34, %35 : vector<8x32xf32>
    %c0_32 = arith.constant 0 : index
    %c0_33 = arith.constant 0 : index
    %37 = vector.load %arg13[%c0_32, %c0_33] : memref<32x32xf32, #tpu.memory_space<vmem>>, vector<32x32xf32>
    %cst_34 = arith.constant dense<0.000000e+00> : vector<8x32xf32>
    %38 = tpu.matmul %36, %37, %cst_34 {dimension_numbers = #tpu.dot_dimension_numbers<[1], [0], [0], [1], [0, 0, 1, 1], [], []>} : vector<8x32xf32>, vector<32x32xf32>, vector<8x32xf32> -> vector<8x32xf32>
    %c0_35 = arith.constant 0 : index
    %c0_36 = arith.constant 0 : index
    %39 = vector.load %arg14[%c0_35, %c0_36] : memref<1x32xf32, #tpu.memory_space<vmem>>, vector<1x32xf32>
    %40 = vector.broadcast %39 : vector<1x32xf32> to vector<8x32xf32>
    %41 = arith.addf %38, %40 : vector<8x32xf32>
    %cst_37 = arith.constant 0.000000e+00 : f32
    %42 = vector.broadcast %cst_37 : f32 to vector<8x32xf32>
    %43 = arith.maximumf %41, %42 : vector<8x32xf32>
    %c0_38 = arith.constant 0 : index
    %c0_39 = arith.constant 0 : index
    %44 = vector.load %arg15[%c0_38, %c0_39] : memref<32x6xf32, #tpu.memory_space<vmem>>, vector<32x6xf32>
    %cst_40 = arith.constant dense<0.000000e+00> : vector<8x6xf32>
    %45 = tpu.matmul %43, %44, %cst_40 {dimension_numbers = #tpu.dot_dimension_numbers<[1], [0], [0], [1], [0, 0, 1, 1], [], []>} : vector<8x32xf32>, vector<32x6xf32>, vector<8x6xf32> -> vector<8x6xf32>
    %c0_41 = arith.constant 0 : index
    %c0_42 = arith.constant 0 : index
    %46 = vector.load %arg16[%c0_41, %c0_42] : memref<1x6xf32, #tpu.memory_space<vmem>>, vector<1x6xf32>
    %47 = vector.broadcast %46 : vector<1x6xf32> to vector<8x6xf32>
    %48 = arith.addf %45, %47 : vector<8x6xf32>
    %49 = math.tanh %48 : vector<8x6xf32>
    %c0_43 = arith.constant 0 : index
    %c0_44 = arith.constant 0 : index
    %50 = vector.load %arg17[%c0_43, %c0_44] : memref<8x6xf32, #tpu.memory_space<vmem>>, vector<8x6xf32>
    tpu.vector_store %arg17[%c0_43, %c0_44], %49 {strides = array<i32>} : memref<8x6xf32, #tpu.memory_space<vmem>>, vector<8x6xf32>,
    return
  }
  func.func @transform_0(%arg0: i32) -> (i32, i32) {
    %c0_i32 = arith.constant 0 : i32
    %c0_i32_0 = arith.constant 0 : i32
    return %arg0, %c0_i32 : i32, i32
  }
  func.func @transform_1(%arg0: i32) -> (i32, i32) {
    %c0_i32 = arith.constant 0 : i32
    %c0_i32_0 = arith.constant 0 : i32
    %c0_i32_1 = arith.constant 0 : i32
    return %c0_i32, %c0_i32_0 : i32, i32
  }
  func.func @transform_2(%arg0: i32) -> (i32, i32) {
    %c0_i32 = arith.constant 0 : i32
    %c0_i32_0 = arith.constant 0 : i32
    %c0_i32_1 = arith.constant 0 : i32
    return %c0_i32, %c0_i32_0 : i32, i32
  }
  func.func @transform_3(%arg0: i32) -> (i32, i32) {
    %c0_i32 = arith.constant 0 : i32
    %c0_i32_0 = arith.constant 0 : i32
    %c0_i32_1 = arith.constant 0 : i32
    return %c0_i32, %c0_i32_0 : i32, i32
  }
  func.func @transform_4(%arg0: i32) -> (i32, i32) {
    %c0_i32 = arith.constant 0 : i32
    %c0_i32_0 = arith.constant 0 : i32
    %c0_i32_1 = arith.constant 0 : i32
    return %c0_i32, %c0_i32_0 : i32, i32
  }
  func.func @transform_5(%arg0: i32) -> (i32, i32) {
    %c0_i32 = arith.constant 0 : i32
    %c0_i32_0 = arith.constant 0 : i32
    %c0_i32_1 = arith.constant 0 : i32
    return %c0_i32, %c0_i32_0 : i32, i32
  }
  func.func @transform_6(%arg0: i32) -> (i32, i32) {
    %c0_i32 = arith.constant 0 : i32
    %c0_i32_0 = arith.constant 0 : i32
    %c0_i32_1 = arith.constant 0 : i32
    return %c0_i32, %c0_i32_0 : i32, i32
  }
  func.func @transform_7(%arg0: i32) -> (i32, i32) {
    %c0_i32 = arith.constant 0 : i32
    %c0_i32_0 = arith.constant 0 : i32
    %c0_i32_1 = arith.constant 0 : i32
    return %c0_i32, %c0_i32_0 : i32, i32
  }
  func.func @transform_8(%arg0: i32) -> (i32, i32) {
    %c0_i32 = arith.constant 0 : i32
    %c0_i32_0 = arith.constant 0 : i32
    %c0_i32_1 = arith.constant 0 : i32
    return %c0_i32, %c0_i32_0 : i32, i32
  }
  func.func @transform_9(%arg0: i32) -> (i32, i32) {
    %c0_i32 = arith.constant 0 : i32
    %c0_i32_0 = arith.constant 0 : i32
    %c0_i32_1 = arith.constant 0 : i32
    return %c0_i32, %c0_i32_0 : i32, i32
  }
  func.func @transform_10(%arg0: i32) -> (i32, i32) {
    %c0_i32 = arith.constant 0 : i32
    %c0_i32_0 = arith.constant 0 : i32
    %c0_i32_1 = arith.constant 0 : i32
    return %c0_i32, %c0_i32_0 : i32, i32
  }
  func.func @transform_11(%arg0: i32) -> (i32, i32) {
    %c0_i32 = arith.constant 0 : i32
    %c0_i32_0 = arith.constant 0 : i32
    %c0_i32_1 = arith.constant 0 : i32
    return %c0_i32, %c0_i32_0 : i32, i32
  }
  func.func @transform_12(%arg0: i32) -> (i32, i32) {
    %c0_i32 = arith.constant 0 : i32
    %c0_i32_0 = arith.constant 0 : i32
    %c0_i32_1 = arith.constant 0 : i32
    return %c0_i32, %c0_i32_0 : i32, i32
  }
  func.func @transform_13(%arg0: i32) -> (i32, i32) {
    %c0_i32 = arith.constant 0 : i32
    %c0_i32_0 = arith.constant 0 : i32
    %c0_i32_1 = arith.constant 0 : i32
    return %c0_i32, %c0_i32_0 : i32, i32
  }
  func.func @transform_14(%arg0: i32) -> (i32, i32) {
    %c0_i32 = arith.constant 0 : i32
    %c0_i32_0 = arith.constant 0 : i32
    %c0_i32_1 = arith.constant 0 : i32
    return %c0_i32, %c0_i32_0 : i32, i32
  }
  func.func @transform_15(%arg0: i32) -> (i32, i32) {
    %c0_i32 = arith.constant 0 : i32
    %c0_i32_0 = arith.constant 0 : i32
    %c0_i32_1 = arith.constant 0 : i32
    return %c0_i32, %c0_i32_0 : i32, i32
  }
  func.func @transform_16(%arg0: i32) -> (i32, i32) {
    %c0_i32 = arith.constant 0 : i32
    %c0_i32_0 = arith.constant 0 : i32
    return %arg0, %c0_i32 : i32, i32
  }
}

</mosaic_0001>

<llo_original>
// kernel: conditional_ae_forward.1
$region0: #{conditional_ae_forward.1}
  #allocation0 [shape = 'u32[]', space=smem, size = 0x4, offset = 0x4, fixed_abs, tag = 'smem constant byte address 0x4 - core index']
  #allocation1 [shape = 'u32[144,128]{1,0:T(1,128)}', space=vmem, size = 0x12000, scoped, tag = 'internal scratch']
  %s0 = inlined_call_operand.vmem [shape: f32[8,18], index: 0, kind: input, shape index: {}]
  %s1 = inlined_call_operand.hbm [shape: f32[18,32], index: 1, kind: input, shape index: {}]
  %s2 = inlined_call_operand.hbm [shape: f32[1,32], index: 2, kind: input, shape index: {}]
  %s3 = inlined_call_operand.vmem [shape: f32[32,32], index: 3, kind: input, shape index: {}]
  %s4 = inlined_call_operand.hbm [shape: f32[1,32], index: 4, kind: input, shape index: {}]
  %s5 = inlined_call_operand.vmem [shape: f32[32,32], index: 5, kind: input, shape index: {}]
  %s6 = inlined_call_operand.hbm [shape: f32[1,32], index: 6, kind: input, shape index: {}]
  %s7 = inlined_call_operand.vmem [shape: f32[32,8], index: 7, kind: input, shape index: {}]
  %s8 = inlined_call_operand.hbm [shape: f32[1,8], index: 8, kind: input, shape index: {}]
  %s9 = inlined_call_operand.hbm [shape: f32[8,32], index: 9, kind: input, shape index: {}]
  %s10 = inlined_call_operand.vmem [shape: f32[18,32], index: 10, kind: input, shape index: {}]
  %s11 = inlined_call_operand.vmem [shape: f32[1,32], index: 11, kind: input, shape index: {}]
  %s12 = inlined_call_operand.vmem [shape: f32[32,32], index: 12, kind: input, shape index: {}]
  %s13 = inlined_call_operand.hbm [shape: f32[1,32], index: 13, kind: input, shape index: {}]
  %s14 = inlined_call_operand.vmem [shape: f32[32,6], index: 14, kind: input, shape index: {}]
  %s15 = inlined_call_operand.vmem [shape: f32[1,6], index: 15, kind: input, shape index: {}]
  %s16 = inlined_call_operand.hbm [shape: f32[8,6], index: 16, kind: output, shape index: {}]
  %s17 = sld [smem:[#allocation0]]
  $region102: #{conditional_ae_forward.1} parent=0
    _
  %s19 = ssub.s32 1, %s17
  %s20 = scalar_select 0, %s19, %s17
  $region1: #{conditional_ae_forward.1} parent=0
    #allocation2 [shape = 'u8[12288]{0}', space=vmem, size = 0x3000, scoped, tag = 'input window, operand 1, single buffered']
    #allocation3 [shape = 's32[1]{0}', space=sflag, size = 0x4, scoped, tag = 'scoped memory for conditional_ae_forward.1']
    #allocation4 [shape = 's32[1]{0}', space=sflag, size = 0x4, scoped, tag = 'scoped memory for conditional_ae_forward.1']
    #allocation5 [shape = 'u8[512]{0}', space=vmem, size = 0x400, scoped, tag = 'input window, operand 2, single buffered']
    #allocation6 [shape = 's32[1]{0}', space=sflag, size = 0x4, scoped, tag = 'scoped memory for conditional_ae_forward.1']
    #allocation7 [shape = 'u8[512]{0}', space=vmem, size = 0x400, scoped, tag = 'input window, operand 4, single buffered']
    #allocation8 [shape = 'u8[512]{0}', space=vmem, size = 0x400, scoped, tag = 'input window, operand 6, single buffered']
    #allocation9 [shape = 's32[1]{0}', space=sflag, size = 0x4, scoped, tag = 'scoped memory for conditional_ae_forward.1']
    #allocation10 [shape = 'u8[512]{0}', space=vmem, size = 0x400, scoped, tag = 'input window, operand 8, single buffered']
    #allocation11 [shape = 'u8[4096]{0}', space=vmem, size = 0x1000, scoped, tag = 'input window, operand 9, single buffered']
    #allocation12 [shape = 's32[1]{0}', space=sflag, size = 0x4, scoped, tag = 'scoped memory for conditional_ae_forward.1']
    #allocation13 [shape = 'u8[512]{0}', space=vmem, size = 0x400, scoped, tag = 'input window, operand 13, single buffered']
    #allocation14 [shape = 'u8[4096]{0}', space=vmem, size = 0x1000, scoped, tag = 'output window, operand 0, single buffered']
    %21 = vsyncpa [#allocation3], 0
    %22 = vsyncpa [#allocation6], 0
    %23 = vsyncpa [#allocation9], 0
    %24 = vsyncpa [#allocation12], 0
    %25 = vsyncpa [#allocation4], 0
    // Predicated region
    $region2: #{conditional_ae_forward.1} parent=1 // pred_check
      _
    $region3: #{conditional_ae_forward.1} parent=1 // pred_check_branch
      %27 = sbr.rel (0) target = $region5
    $region4: #{conditional_ae_forward.1} parent=1 // pred_region
      _
    $region5: #{conditional_ae_forward.1} parent=1 // pred_fallthru
      _
    // Predicated region
    $region6: #{conditional_ae_forward.1} parent=1 // pred_check
      _
    $region7: #{conditional_ae_forward.1} parent=1 // pred_check_branch
      %29 = sbr.rel (0) target = $region9
    $region8: #{conditional_ae_forward.1} parent=1 // pred_region
      %s31 = ssub.s32 384, 384
      %32 = vsyncadd [#allocation3], %s31
      %s33 = sshll.u32 [#allocation2], 4
      %s34 = int_to_ptr.vmem [resolvable:$true] %s33
      %39 = dma.hbm_to_vmem [thread:$0]  %s1, 384, %s34, [#allocation3], 128, 128, 8
    $region9: #{conditional_ae_forward.1} parent=1 // pred_fallthru
      _
    // Predicated region
    $region10: #{conditional_ae_forward.1} parent=1 // pred_check
      _
    $region11: #{conditional_ae_forward.1} parent=1 // pred_check_branch
      %41 = sbr.rel (0) target = $region13
    $region12: #{conditional_ae_forward.1} parent=1 // pred_region
      %s43 = ssub.s32 16, 16
      %44 = vsyncadd [#allocation6], %s43
      %s46 = sshll.u32 [#allocation5], 4
      %s47 = int_to_ptr.vmem [resolvable:$true] %s46
      %49 = dma.hbm_to_vmem [thread:$0]  %s2, 16, %s47, [#allocation6]
    $region13: #{conditional_ae_forward.1} parent=1 // pred_fallthru
      _
    // Predicated region
    $region14: #{conditional_ae_forward.1} parent=1 // pred_check
      _
    $region15: #{conditional_ae_forward.1} parent=1 // pred_check_branch
      %51 = sbr.rel (0) target = $region17
    $region16: #{conditional_ae_forward.1} parent=1 // pred_region
      _
    $region17: #{conditional_ae_forward.1} parent=1 // pred_fallthru
      _
    // Predicated region
    $region18: #{conditional_ae_forward.1} parent=1 // pred_check
      _
    $region19: #{conditional_ae_forward.1} parent=1 // pred_check_branch
      %53 = sbr.rel (0) target = $region21
    $region20: #{conditional_ae_forward.1} parent=1 // pred_region
      %s55 = ssub.s32 16, 16
      %56 = vsyncadd [#allocation6], %s55
      %s58 = sshll.u32 [#allocation7], 4
      %s59 = int_to_ptr.vmem [resolvable:$true] %s58
      %61 = dma.hbm_to_vmem [thread:$0]  %s4, 16, %s59, [#allocation6]
    $region21: #{conditional_ae_forward.1} parent=1 // pred_fallthru
      _
    // Predicated region
    $region22: #{conditional_ae_forward.1} parent=1 // pred_check
      _
    $region23: #{conditional_ae_forward.1} parent=1 // pred_check_branch
      %63 = sbr.rel (0) target = $region25
    $region24: #{conditional_ae_forward.1} parent=1 // pred_region
      _
    $region25: #{conditional_ae_forward.1} parent=1 // pred_fallthru
      _
    // Predicated region
    $region26: #{conditional_ae_forward.1} parent=1 // pred_check
      _
    $region27: #{conditional_ae_forward.1} parent=1 // pred_check_branch
      %65 = sbr.rel (0) target = $region29
    $region28: #{conditional_ae_forward.1} parent=1 // pred_region
      %s67 = ssub.s32 16, 16
      %68 = vsyncadd [#allocation9], %s67
      %s70 = sshll.u32 [#allocation8], 4
      %s71 = int_to_ptr.vmem [resolvable:$true] %s70
      %73 = dma.hbm_to_vmem [thread:$0]  %s6, 16, %s71, [#allocation9]
    $region29: #{conditional_ae_forward.1} parent=1 // pred_fallthru
      _
    // Predicated region
    $region30: #{conditional_ae_forward.1} parent=1 // pred_check
      _
    $region31: #{conditional_ae_forward.1} parent=1 // pred_check_branch
      %75 = sbr.rel (0) target = $region33
    $region32: #{conditional_ae_forward.1} parent=1 // pred_region
      _
    $region33: #{conditional_ae_forward.1} parent=1 // pred_fallthru
      _
    // Predicated region
    $region34: #{conditional_ae_forward.1} parent=1 // pred_check
      _
    $region35: #{conditional_ae_forward.1} parent=1 // pred_check_branch
      %77 = sbr.rel (0) target = $region37
    $region36: #{conditional_ae_forward.1} parent=1 // pred_region
      %s79 = ssub.s32 16, 16
      %80 = vsyncadd [#allocation9], %s79
      %s82 = sshll.u32 [#allocation10], 4
      %s83 = int_to_ptr.vmem [resolvable:$true] %s82
      %85 = dma.hbm_to_vmem [thread:$0]  %s8, 16, %s83, [#allocation9]
    $region37: #{conditional_ae_forward.1} parent=1 // pred_fallthru
      _
    // Predicated region
    $region38: #{conditional_ae_forward.1} parent=1 // pred_check
      _
    $region39: #{conditional_ae_forward.1} parent=1 // pred_check_branch
      %87 = sbr.rel (0) target = $region41
    $region40: #{conditional_ae_forward.1} parent=1 // pred_region
      %s89 = ssub.s32 128, 128
      %90 = vsyncadd [#allocation12], %s89
      %s92 = sshll.u32 [#allocation11], 4
      %s93 = int_to_ptr.vmem [resolvable:$true] %s92
      %95 = dma.hbm_to_vmem [thread:$0]  %s9, 128, %s93, [#allocation12]
    $region41: #{conditional_ae_forward.1} parent=1 // pred_fallthru
      _
    // Predicated region
    $region42: #{conditional_ae_forward.1} parent=1 // pred_check
      _
    $region43: #{conditional_ae_forward.1} parent=1 // pred_check_branch
      %97 = sbr.rel (0) target = $region45
    $region44: #{conditional_ae_forward.1} parent=1 // pred_region
      _
    $region45: #{conditional_ae_forward.1} parent=1 // pred_fallthru
      _
    // Predicated region
    $region46: #{conditional_ae_forward.1} parent=1 // pred_check
      _
    $region47: #{conditional_ae_forward.1} parent=1 // pred_check_branch
      %99 = sbr.rel (0) target = $region49
    $region48: #{conditional_ae_forward.1} parent=1 // pred_region
      _
    $region49: #{conditional_ae_forward.1} parent=1 // pred_fallthru
      _
    // Predicated region
    $region50: #{conditional_ae_forward.1} parent=1 // pred_check
      _
    $region51: #{conditional_ae_forward.1} parent=1 // pred_check_branch
      %101 = sbr.rel (0) target = $region53
    $region52: #{conditional_ae_forward.1} parent=1 // pred_region
      _
    $region53: #{conditional_ae_forward.1} parent=1 // pred_fallthru
      _
    // Predicated region
    $region54: #{conditional_ae_forward.1} parent=1 // pred_check
      _
    $region55: #{conditional_ae_forward.1} parent=1 // pred_check_branch
      %103 = sbr.rel (0) target = $region57
    $region56: #{conditional_ae_forward.1} parent=1 // pred_region
      %s105 = ssub.s32 16, 16
      %106 = vsyncadd [#allocation12], %s105
      %s108 = sshll.u32 [#allocation13], 4
      %s109 = int_to_ptr.vmem [resolvable:$true] %s108
      %111 = dma.hbm_to_vmem [thread:$0]  %s13, 16, %s109, [#allocation12]
    $region57: #{conditional_ae_forward.1} parent=1 // pred_fallthru
      _
    // Predicated region
    $region58: #{conditional_ae_forward.1} parent=1 // pred_check
      _
    $region59: #{conditional_ae_forward.1} parent=1 // pred_check_branch
      %113 = sbr.rel (0) target = $region61
    $region60: #{conditional_ae_forward.1} parent=1 // pred_region
      _
    $region61: #{conditional_ae_forward.1} parent=1 // pred_fallthru
      _
    // Predicated region
    $region62: #{conditional_ae_forward.1} parent=1 // pred_check
      _
    $region63: #{conditional_ae_forward.1} parent=1 // pred_check_branch
      %115 = sbr.rel (0) target = $region65
    $region64: #{conditional_ae_forward.1} parent=1 // pred_region
      _
    $region65: #{conditional_ae_forward.1} parent=1 // pred_fallthru
      _
    // Predicated region
    $region66: #{conditional_ae_forward.1} parent=1 // pred_check
      _
    $region67: #{conditional_ae_forward.1} parent=1 // pred_check_branch
      %117 = sbr.rel (0) target = $region69
    $region68: #{conditional_ae_forward.1} parent=1 // pred_region
      %118 = dma.done [#allocation3], 384
    $region69: #{conditional_ae_forward.1} parent=1 // pred_fallthru
      _
    // Predicated region
    $region70: #{conditional_ae_forward.1} parent=1 // pred_check
      _
    $region71: #{conditional_ae_forward.1} parent=1 // pred_check_branch
      %120 = sbr.rel (0) target = $region73
    $region72: #{conditional_ae_forward.1} parent=1 // pred_region
      %121 = dma.done [#allocation6], 16
    $region73: #{conditional_ae_forward.1} parent=1 // pred_fallthru
      _
    // Predicated region
    $region74: #{conditional_ae_forward.1} parent=1 // pred_check
      _
    $region75: #{conditional_ae_forward.1} parent=1 // pred_check_branch
      %123 = sbr.rel (0) target = $region77
    $region76: #{conditional_ae_forward.1} parent=1 // pred_region
      %124 = dma.done [#allocation6], 16
    $region77: #{conditional_ae_forward.1} parent=1 // pred_fallthru
      _
    // Predicated region
    $region78: #{conditional_ae_forward.1} parent=1 // pred_check
      _
    $region79: #{conditional_ae_forward.1} parent=1 // pred_check_branch
      %126 = sbr.rel (0) target = $region81
    $region80: #{conditional_ae_forward.1} parent=1 // pred_region
      %127 = dma.done [#allocation9], 16
    $region81: #{conditional_ae_forward.1} parent=1 // pred_fallthru
      _
    // Predicated region
    $region82: #{conditional_ae_forward.1} parent=1 // pred_check
      _
    $region83: #{conditional_ae_forward.1} parent=1 // pred_check_branch
      %129 = sbr.rel (0) target = $region85
    $region84: #{conditional_ae_forward.1} parent=1 // pred_region
      %130 = dma.done [#allocation9], 16
    $region85: #{conditional_ae_forward.1} parent=1 // pred_fallthru
      _
    // Predicated region
    $region86: #{conditional_ae_forward.1} parent=1 // pred_check
      _
    $region87: #{conditional_ae_forward.1} parent=1 // pred_check_branch
      %132 = sbr.rel (0) target = $region89
    $region88: #{conditional_ae_forward.1} parent=1 // pred_region
      %133 = dma.done [#allocation12], 128
    $region89: #{conditional_ae_forward.1} parent=1 // pred_fallthru
      _
    // Predicated region
    $region90: #{conditional_ae_forward.1} parent=1 // pred_check
      _
    $region91: #{conditional_ae_forward.1} parent=1 // pred_check_branch
      %135 = sbr.rel (0) target = $region93
    $region92: #{conditional_ae_forward.1} parent=1 // pred_region
      %136 = dma.done [#allocation12], 16
    $region93: #{conditional_ae_forward.1} parent=1 // pred_fallthru
      _
    %v137 = vld [vmem:[%s0] sm:$0xff]
    %v138 = vld [vmem:[#allocation2] sm:$0xff]
    %v139 = vld [vmem:[#allocation2 + $0x8] sm:$0xff]
    %v140 = vld [vmem:[#allocation2 + $0x10] sm:$0x3]
    %v141 = vld [vmem:[#allocation5] sm:$0x1]
    %v143 = vlaneseq
    %v144 = vshrl.u32 %v143, 7
    %v145 = vsub.s32 0, %v144
    %v146 = vrot.slane %v141, %v145
    %vm148 = vcmask 146432
    %v150 = vsel %vm148, %v137, 0
    %vm152 = vcmask 1041408
    %v154 = vsel %vm152, %v140, 0
    %156 = vmatprep.subr.mxu0 0.0
    %157 = vmatpush1.msra.mxu0 0.0
    %158 = vmatprep.subr.mxu0 0.0
    %159 = vmatpush1.msra.mxu0 0.0
    %160 = vmatprep.subr.mxu0 0.0
    %161 = vmatpush1.msra.mxu0 0.0
    %162 = vmatprep.subr.mxu0 0.0
    %163 = vmatpush1.msra.mxu0 0.0
    %164 = vmatprep.subr.mxu0 0.0
    %165 = vmatpush1.msra.mxu0 0.0
    %166 = vmatprep.subr.mxu0 0.0
    %167 = vmatpush1.msra.mxu0 0.0
    %168 = vmatprep.subr.mxu0 0.0
    %169 = vmatpush1.msra.mxu0 0.0
    %170 = vmatprep.subr.mxu0 0.0
    %171 = vmatpush1.msra.mxu0 0.0
    %172 = vmatprep.subr.mxu0 0.0
    %173 = vmatpush1.msra.mxu0 0.0
    %174 = vmatprep.subr.mxu0 0.0
    %175 = vmatpush1.msra.mxu0 0.0
    %176 = vmatprep.subr.mxu0 0.0
    %177 = vmatpush1.msra.mxu0 0.0
    %178 = vmatprep.subr.mxu0 0.0
    %179 = vmatpush1.msra.mxu0 0.0
    %180 = vmatprep.subr.mxu0 0.0
    %181 = vmatpush1.msra.mxu0 0.0
    %182 = vmatprep.subr.mxu0 0.0
    %183 = vmatpush1.msra.mxu0 %v154
    %184 = vmatprep.subr.mxu0 0.0
    %185 = vmatpush1.msra.mxu0 %v139
    %186 = vmatprep.subr.mxu0 0.0
    %187 = vmatpush1.msra.mxu0 %v138
    %188 = vmatprep.subr.mxu0 0.0
    %189 = vmatpush2.msra.mxu0 0.0
    %190 = vmatprep.subr.mxu0 0.0
    %191 = vmatpush2.msra.mxu0 0.0
    %192 = vmatprep.subr.mxu0 0.0
    %193 = vmatpush2.msra.mxu0 0.0
    %194 = vmatprep.subr.mxu0 0.0
    %195 = vmatpush2.msra.mxu0 0.0
    %196 = vmatprep.subr.mxu0 0.0
    %197 = vmatpush2.msra.mxu0 0.0
    %198 = vmatprep.subr.mxu0 0.0
    %199 = vmatpush2.msra.mxu0 0.0
    %200 = vmatprep.subr.mxu0 0.0
    %201 = vmatpush2.msra.mxu0 0.0
    %202 = vmatprep.subr.mxu0 0.0
    %203 = vmatpush2.msra.mxu0 0.0
    %204 = vmatprep.subr.mxu0 0.0
    %205 = vmatpush2.msra.mxu0 0.0
    %206 = vmatprep.subr.mxu0 0.0
    %207 = vmatpush2.msra.mxu0 0.0
    %208 = vmatprep.subr.mxu0 0.0
    %209 = vmatpush2.msra.mxu0 0.0
    %210 = vmatprep.subr.mxu0 0.0
    %211 = vmatpush2.msra.mxu0 0.0
    %212 = vmatprep.subr.mxu0 0.0
    %213 = vmatpush2.msra.mxu0 0.0
    %214 = vmatprep.subr.mxu0 0.0
    %215 = vmatpush2.msra.mxu0 0.0
    %216 = vmatprep.subr.mxu0 0.0
    %217 = vmatpush2.msra.mxu0 0.0
    %218 = vmatprep.subr.mxu0 0.0
    %219 = vmatpush2.msra.mxu0 0.0
    %220 = vmatprep.mubr.f32.mxu0 0.0
    %221 = vmatmul.mubr.f32.gmra.mxu0 %v150
    %v222 = vpop.f32.mrf.mxu0
    %v223 = vadd.f32 %v146, %v222
    %v224 = vpop.f32.mrf.mxu0
    %225 = vdwg.mxu0
    %v226 = vmax.f32 %v223, 0.0
    %v227 = vld [vmem:[%s3] sm:$0xff]
    %v228 = vld [vmem:[%s3 + $0x8] sm:$0xff]
    %v229 = vld [vmem:[%s3 + $0x10] sm:$0xff]
    %v230 = vld [vmem:[%s3 + $0x18] sm:$0xff]
    %v231 = vld [vmem:[#allocation7] sm:$0x1]
    %v233 = vlaneseq
    %v234 = vshrl.u32 %v233, 7
    %v235 = vsub.s32 0, %v234
    %v236 = vrot.slane %v231, %v235
    %vm238 = vcmask 261120
    %v240 = vsel %vm238, %v226, 0
    %242 = vmatprep.subr.mxu0 0.0
    %243 = vmatpush1.msra.mxu0 0.0
    %244 = vmatprep.subr.mxu0 0.0
    %245 = vmatpush1.msra.mxu0 0.0
    %246 = vmatprep.subr.mxu0 0.0
    %247 = vmatpush1.msra.mxu0 0.0
    %248 = vmatprep.subr.mxu0 0.0
    %249 = vmatpush1.msra.mxu0 0.0
    %250 = vmatprep.subr.mxu0 0.0
    %251 = vmatpush1.msra.mxu0 0.0
    %252 = vmatprep.subr.mxu0 0.0
    %253 = vmatpush1.msra.mxu0 0.0
    %254 = vmatprep.subr.mxu0 0.0
    %255 = vmatpush1.msra.mxu0 0.0
    %256 = vmatprep.subr.mxu0 0.0
    %257 = vmatpush1.msra.mxu0 0.0
    %258 = vmatprep.subr.mxu0 0.0
    %259 = vmatpush1.msra.mxu0 0.0
    %260 = vmatprep.subr.mxu0 0.0
    %261 = vmatpush1.msra.mxu0 0.0
    %262 = vmatprep.subr.mxu0 0.0
    %263 = vmatpush1.msra.mxu0 0.0
    %264 = vmatprep.subr.mxu0 0.0
    %265 = vmatpush1.msra.mxu0 0.0
    %266 = vmatprep.subr.mxu0 0.0
    %267 = vmatpush1.msra.mxu0 %v230
    %268 = vmatprep.subr.mxu0 0.0
    %269 = vmatpush1.msra.mxu0 %v229
    %270 = vmatprep.subr.mxu0 0.0
    %271 = vmatpush1.msra.mxu0 %v228
    %272 = vmatprep.subr.mxu0 0.0
    %273 = vmatpush1.msra.mxu0 %v227
    %274 = vmatprep.subr.mxu0 0.0
    %275 = vmatpush2.msra.mxu0 0.0
    %276 = vmatprep.subr.mxu0 0.0
    %277 = vmatpush2.msra.mxu0 0.0
    %278 = vmatprep.subr.mxu0 0.0
    %279 = vmatpush2.msra.mxu0 0.0
    %280 = vmatprep.subr.mxu0 0.0
    %281 = vmatpush2.msra.mxu0 0.0
    %282 = vmatprep.subr.mxu0 0.0
    %283 = vmatpush2.msra.mxu0 0.0
    %284 = vmatprep.subr.mxu0 0.0
    %285 = vmatpush2.msra.mxu0 0.0
    %286 = vmatprep.subr.mxu0 0.0
    %287 = vmatpush2.msra.mxu0 0.0
    %288 = vmatprep.subr.mxu0 0.0
    %289 = vmatpush2.msra.mxu0 0.0
    %290 = vmatprep.subr.mxu0 0.0
    %291 = vmatpush2.msra.mxu0 0.0
    %292 = vmatprep.subr.mxu0 0.0
    %293 = vmatpush2.msra.mxu0 0.0
    %294 = vmatprep.subr.mxu0 0.0
    %295 = vmatpush2.msra.mxu0 0.0
    %296 = vmatprep.subr.mxu0 0.0
    %297 = vmatpush2.msra.mxu0 0.0
    %298 = vmatprep.subr.mxu0 0.0
    %299 = vmatpush2.msra.mxu0 0.0
    %300 = vmatprep.subr.mxu0 0.0
    %301 = vmatpush2.msra.mxu0 0.0
    %302 = vmatprep.subr.mxu0 0.0
    %303 = vmatpush2.msra.mxu0 0.0
    %304 = vmatprep.subr.mxu0 0.0
    %305 = vmatpush2.msra.mxu0 0.0
    %306 = vmatprep.mubr.f32.mxu0 0.0
    %307 = vmatmul.mubr.f32.gmra.mxu0 %v240
    %v308 = vpop.f32.mrf.mxu0
    %v309 = vadd.f32 %v236, %v308
    %v310 = vpop.f32.mrf.mxu0
    %311 = vdwg.mxu0
    %v312 = vmax.f32 %v309, 0.0
    %v313 = vld [vmem:[%s5] sm:$0xff]
    %v314 = vld [vmem:[%s5 + $0x8] sm:$0xff]
    %v315 = vld [vmem:[%s5 + $0x10] sm:$0xff]
    %v316 = vld [vmem:[%s5 + $0x18] sm:$0xff]
    %v317 = vld [vmem:[#allocation8] sm:$0x1]
    %v319 = vlaneseq
    %v320 = vshrl.u32 %v319, 7
    %v321 = vsub.s32 0, %v320
    %v322 = vrot.slane %v317, %v321
    %v325 = vsel %vm238, %v312, 0
    %327 = vmatprep.subr.mxu0 0.0
    %328 = vmatpush1.msra.mxu0 0.0
    %329 = vmatprep.subr.mxu0 0.0
    %330 = vmatpush1.msra.mxu0 0.0
    %331 = vmatprep.subr.mxu0 0.0
    %332 = vmatpush1.msra.mxu0 0.0
    %333 = vmatprep.subr.mxu0 0.0
    %334 = vmatpush1.msra.mxu0 0.0
    %335 = vmatprep.subr.mxu0 0.0
    %336 = vmatpush1.msra.mxu0 0.0
    %337 = vmatprep.subr.mxu0 0.0
    %338 = vmatpush1.msra.mxu0 0.0
    %339 = vmatprep.subr.mxu0 0.0
    %340 = vmatpush1.msra.mxu0 0.0
    %341 = vmatprep.subr.mxu0 0.0
    %342 = vmatpush1.msra.mxu0 0.0
    %343 = vmatprep.subr.mxu0 0.0
    %344 = vmatpush1.msra.mxu0 0.0
    %345 = vmatprep.subr.mxu0 0.0
    %346 = vmatpush1.msra.mxu0 0.0
    %347 = vmatprep.subr.mxu0 0.0
    %348 = vmatpush1.msra.mxu0 0.0
    %349 = vmatprep.subr.mxu0 0.0
    %350 = vmatpush1.msra.mxu0 0.0
    %351 = vmatprep.subr.mxu0 0.0
    %352 = vmatpush1.msra.mxu0 %v316
    %353 = vmatprep.subr.mxu0 0.0
    %354 = vmatpush1.msra.mxu0 %v315
    %355 = vmatprep.subr.mxu0 0.0
    %356 = vmatpush1.msra.mxu0 %v314
    %357 = vmatprep.subr.mxu0 0.0
    %358 = vmatpush1.msra.mxu0 %v313
    %359 = vmatprep.subr.mxu0 0.0
    %360 = vmatpush2.msra.mxu0 0.0
    %361 = vmatprep.subr.mxu0 0.0
    %362 = vmatpush2.msra.mxu0 0.0
    %363 = vmatprep.subr.mxu0 0.0
    %364 = vmatpush2.msra.mxu0 0.0
    %365 = vmatprep.subr.mxu0 0.0
    %366 = vmatpush2.msra.mxu0 0.0
    %367 = vmatprep.subr.mxu0 0.0
    %368 = vmatpush2.msra.mxu0 0.0
    %369 = vmatprep.subr.mxu0 0.0
    %370 = vmatpush2.msra.mxu0 0.0
    %371 = vmatprep.subr.mxu0 0.0
    %372 = vmatpush2.msra.mxu0 0.0
    %373 = vmatprep.subr.mxu0 0.0
    %374 = vmatpush2.msra.mxu0 0.0
    %375 = vmatprep.subr.mxu0 0.0
    %376 = vmatpush2.msra.mxu0 0.0
    %377 = vmatprep.subr.mxu0 0.0
    %378 = vmatpush2.msra.mxu0 0.0
    %379 = vmatprep.subr.mxu0 0.0
    %380 = vmatpush2.msra.mxu0 0.0
    %381 = vmatprep.subr.mxu0 0.0
    %382 = vmatpush2.msra.mxu0 0.0
    %383 = vmatprep.subr.mxu0 0.0
    %384 = vmatpush2.msra.mxu0 0.0
    %385 = vmatprep.subr.mxu0 0.0
    %386 = vmatpush2.msra.mxu0 0.0
    %387 = vmatprep.subr.mxu0 0.0
    %388 = vmatpush2.msra.mxu0 0.0
    %389 = vmatprep.subr.mxu0 0.0
    %390 = vmatpush2.msra.mxu0 0.0
    %391 = vmatprep.mubr.f32.mxu0 0.0
    %392 = vmatmul.mubr.f32.gmra.mxu0 %v325
    %v393 = vpop.f32.mrf.mxu0
    %v394 = vadd.f32 %v322, %v393
    %v395 = vpop.f32.mrf.mxu0
    %396 = vdwg.mxu0
    %v397 = vmax.f32 %v394, 0.0
    %v398 = vld [vmem:[%s7] sm:$0xff]
    %v399 = vld [vmem:[%s7 + $0x8] sm:$0xff]
    %v400 = vld [vmem:[%s7 + $0x10] sm:$0xff]
    %v401 = vld [vmem:[%s7 + $0x18] sm:$0xff]
    %v402 = vld [vmem:[#allocation10] sm:$0x1]
    %v404 = vlaneseq
    %v405 = vshrl.u32 %v404, 7
    %v406 = vsub.s32 0, %v405
    %v407 = vrot.slane %v402, %v406
    %v410 = vsel %vm238, %v397, 0
    %412 = vmatprep.subr.mxu0 0.0
    %413 = vmatpush1.msra.mxu0 0.0
    %414 = vmatprep.subr.mxu0 0.0
    %415 = vmatpush1.msra.mxu0 0.0
    %416 = vmatprep.subr.mxu0 0.0
    %417 = vmatpush1.msra.mxu0 0.0
    %418 = vmatprep.subr.mxu0 0.0
    %419 = vmatpush1.msra.mxu0 0.0
    %420 = vmatprep.subr.mxu0 0.0
    %421 = vmatpush1.msra.mxu0 0.0
    %422 = vmatprep.subr.mxu0 0.0
    %423 = vmatpush1.msra.mxu0 0.0
    %424 = vmatprep.subr.mxu0 0.0
    %425 = vmatpush1.msra.mxu0 0.0
    %426 = vmatprep.subr.mxu0 0.0
    %427 = vmatpush1.msra.mxu0 0.0
    %428 = vmatprep.subr.mxu0 0.0
    %429 = vmatpush1.msra.mxu0 0.0
    %430 = vmatprep.subr.mxu0 0.0
    %431 = vmatpush1.msra.mxu0 0.0
    %432 = vmatprep.subr.mxu0 0.0
    %433 = vmatpush1.msra.mxu0 0.0
    %434 = vmatprep.subr.mxu0 0.0
    %435 = vmatpush1.msra.mxu0 0.0
    %436 = vmatprep.subr.mxu0 0.0
    %437 = vmatpush1.msra.mxu0 %v401
    %438 = vmatprep.subr.mxu0 0.0
    %439 = vmatpush1.msra.mxu0 %v400
    %440 = vmatprep.subr.mxu0 0.0
    %441 = vmatpush1.msra.mxu0 %v399
    %442 = vmatprep.subr.mxu0 0.0
    %443 = vmatpush1.msra.mxu0 %v398
    %444 = vmatprep.subr.mxu0 0.0
    %445 = vmatpush2.msra.mxu0 0.0
    %446 = vmatprep.subr.mxu0 0.0
    %447 = vmatpush2.msra.mxu0 0.0
    %448 = vmatprep.subr.mxu0 0.0
    %449 = vmatpush2.msra.mxu0 0.0
    %450 = vmatprep.subr.mxu0 0.0
    %451 = vmatpush2.msra.mxu0 0.0
    %452 = vmatprep.subr.mxu0 0.0
    %453 = vmatpush2.msra.mxu0 0.0
    %454 = vmatprep.subr.mxu0 0.0
    %455 = vmatpush2.msra.mxu0 0.0
    %456 = vmatprep.subr.mxu0 0.0
    %457 = vmatpush2.msra.mxu0 0.0
    %458 = vmatprep.subr.mxu0 0.0
    %459 = vmatpush2.msra.mxu0 0.0
    %460 = vmatprep.subr.mxu0 0.0
    %461 = vmatpush2.msra.mxu0 0.0
    %462 = vmatprep.subr.mxu0 0.0
    %463 = vmatpush2.msra.mxu0 0.0
    %464 = vmatprep.subr.mxu0 0.0
    %465 = vmatpush2.msra.mxu0 0.0
    %466 = vmatprep.subr.mxu0 0.0
    %467 = vmatpush2.msra.mxu0 0.0
    %468 = vmatprep.subr.mxu0 0.0
    %469 = vmatpush2.msra.mxu0 0.0
    %470 = vmatprep.subr.mxu0 0.0
    %471 = vmatpush2.msra.mxu0 0.0
    %472 = vmatprep.subr.mxu0 0.0
    %473 = vmatpush2.msra.mxu0 0.0
    %474 = vmatprep.subr.mxu0 0.0
    %475 = vmatpush2.msra.mxu0 0.0
    %476 = vmatprep.mubr.f32.mxu0 0.0
    %477 = vmatmul.mubr.f32.gmra.mxu0 %v410
    %v478 = vpop.f32.mrf.mxu0
    %v479 = vadd.f32 %v407, %v478
    %v480 = vpop.f32.mrf.mxu0
    %481 = vdwg.mxu0
    %v482 = vld [vmem:[#allocation11] sm:$0xff]
    %v483 = vld [vmem:[%s10] sm:$0xff]
    %v484 = vld [vmem:[%s10 + $0x8] sm:$0xff]
    %v485 = vld [vmem:[%s10 + $0x10] sm:$0x3]
    %v487 = vsel %vm152, %v485, 0
    %489 = vmatprep.subr.mxu0 0.0
    %490 = vmatpush1.msra.mxu0 0.0
    %491 = vmatprep.subr.mxu0 0.0
    %492 = vmatpush1.msra.mxu0 0.0
    %493 = vmatprep.subr.mxu0 0.0
    %494 = vmatpush1.msra.mxu0 0.0
    %495 = vmatprep.subr.mxu0 0.0
    %496 = vmatpush1.msra.mxu0 0.0
    %497 = vmatprep.subr.mxu0 0.0
    %498 = vmatpush1.msra.mxu0 0.0
    %499 = vmatprep.subr.mxu0 0.0
    %500 = vmatpush1.msra.mxu0 0.0
    %501 = vmatprep.subr.mxu0 0.0
    %502 = vmatpush1.msra.mxu0 0.0
    %503 = vmatprep.subr.mxu0 0.0
    %504 = vmatpush1.msra.mxu0 0.0
    %505 = vmatprep.subr.mxu0 0.0
    %506 = vmatpush1.msra.mxu0 0.0
    %507 = vmatprep.subr.mxu0 0.0
    %508 = vmatpush1.msra.mxu0 0.0
    %509 = vmatprep.subr.mxu0 0.0
    %510 = vmatpush1.msra.mxu0 0.0
    %511 = vmatprep.subr.mxu0 0.0
    %512 = vmatpush1.msra.mxu0 0.0
    %513 = vmatprep.subr.mxu0 0.0
    %514 = vmatpush1.msra.mxu0 0.0
    %515 = vmatprep.subr.mxu0 0.0
    %516 = vmatpush1.msra.mxu0 %v487
    %517 = vmatprep.subr.mxu0 0.0
    %518 = vmatpush1.msra.mxu0 %v484
    %519 = vmatprep.subr.mxu0 0.0
    %520 = vmatpush1.msra.mxu0 %v483
    %521 = vmatprep.subr.mxu0 0.0
    %522 = vmatpush2.msra.mxu0 0.0
    %523 = vmatprep.subr.mxu0 0.0
    %524 = vmatpush2.msra.mxu0 0.0
    %525 = vmatprep.subr.mxu0 0.0
    %526 = vmatpush2.msra.mxu0 0.0
    %527 = vmatprep.subr.mxu0 0.0
    %528 = vmatpush2.msra.mxu0 0.0
    %529 = vmatprep.subr.mxu0 0.0
    %530 = vmatpush2.msra.mxu0 0.0
    %531 = vmatprep.subr.mxu0 0.0
    %532 = vmatpush2.msra.mxu0 0.0
    %533 = vmatprep.subr.mxu0 0.0
    %534 = vmatpush2.msra.mxu0 0.0
    %535 = vmatprep.subr.mxu0 0.0
    %536 = vmatpush2.msra.mxu0 0.0
    %537 = vmatprep.subr.mxu0 0.0
    %538 = vmatpush2.msra.mxu0 0.0
    %539 = vmatprep.subr.mxu0 0.0
    %540 = vmatpush2.msra.mxu0 0.0
    %541 = vmatprep.subr.mxu0 0.0
    %542 = vmatpush2.msra.mxu0 0.0
    %543 = vmatprep.subr.mxu0 0.0
    %544 = vmatpush2.msra.mxu0 0.0
    %545 = vmatprep.subr.mxu0 0.0
    %546 = vmatpush2.msra.mxu0 0.0
    %547 = vmatprep.subr.mxu0 0.0
    %548 = vmatpush2.msra.mxu0 0.0
    %549 = vmatprep.subr.mxu0 0.0
    %550 = vmatpush2.msra.mxu0 0.0
    %551 = vmatprep.subr.mxu0 0.0
    %552 = vmatpush2.msra.mxu0 0.0
    %553 = vmatprep.mubr.f32.mxu0 0.0
    %554 = vmatmul.mubr.f32.gmra.mxu0 %v150
    %v555 = vpop.f32.mrf.mxu0
    %v556 = vadd.f32 0.0, %v555
    %v557 = vpop.f32.mrf.mxu0
    %558 = vdwg.mxu0
    %vm559 = vcmask 64512
    %v561 = vsel %vm559, %v479, 0
    %563 = vmatprep.subr.mxu0 0.0
    %564 = vmatpush1.msra.mxu0 0.0
    %565 = vmatprep.subr.mxu0 0.0
    %566 = vmatpush1.msra.mxu0 0.0
    %567 = vmatprep.subr.mxu0 0.0
    %568 = vmatpush1.msra.mxu0 0.0
    %569 = vmatprep.subr.mxu0 0.0
    %570 = vmatpush1.msra.mxu0 0.0
    %571 = vmatprep.subr.mxu0 0.0
    %572 = vmatpush1.msra.mxu0 0.0
    %573 = vmatprep.subr.mxu0 0.0
    %574 = vmatpush1.msra.mxu0 0.0
    %575 = vmatprep.subr.mxu0 0.0
    %576 = vmatpush1.msra.mxu0 0.0
    %577 = vmatprep.subr.mxu0 0.0
    %578 = vmatpush1.msra.mxu0 0.0
    %579 = vmatprep.subr.mxu0 0.0
    %580 = vmatpush1.msra.mxu0 0.0
    %581 = vmatprep.subr.mxu0 0.0
    %582 = vmatpush1.msra.mxu0 0.0
    %583 = vmatprep.subr.mxu0 0.0
    %584 = vmatpush1.msra.mxu0 0.0
    %585 = vmatprep.subr.mxu0 0.0
    %586 = vmatpush1.msra.mxu0 0.0
    %587 = vmatprep.subr.mxu0 0.0
    %588 = vmatpush1.msra.mxu0 0.0
    %589 = vmatprep.subr.mxu0 0.0
    %590 = vmatpush1.msra.mxu0 0.0
    %591 = vmatprep.subr.mxu0 0.0
    %592 = vmatpush1.msra.mxu0 0.0
    %593 = vmatprep.subr.mxu0 0.0
    %594 = vmatpush1.msra.mxu0 %v482
    %595 = vmatprep.subr.mxu0 0.0
    %596 = vmatpush2.msra.mxu0 0.0
    %597 = vmatprep.subr.mxu0 0.0
    %598 = vmatpush2.msra.mxu0 0.0
    %599 = vmatprep.subr.mxu0 0.0
    %600 = vmatpush2.msra.mxu0 0.0
    %601 = vmatprep.subr.mxu0 0.0
    %602 = vmatpush2.msra.mxu0 0.0
    %603 = vmatprep.subr.mxu0 0.0
    %604 = vmatpush2.msra.mxu0 0.0
    %605 = vmatprep.subr.mxu0 0.0
    %606 = vmatpush2.msra.mxu0 0.0
    %607 = vmatprep.subr.mxu0 0.0
    %608 = vmatpush2.msra.mxu0 0.0
    %609 = vmatprep.subr.mxu0 0.0
    %610 = vmatpush2.msra.mxu0 0.0
    %611 = vmatprep.subr.mxu0 0.0
    %612 = vmatpush2.msra.mxu0 0.0
    %613 = vmatprep.subr.mxu0 0.0
    %614 = vmatpush2.msra.mxu0 0.0
    %615 = vmatprep.subr.mxu0 0.0
    %616 = vmatpush2.msra.mxu0 0.0
    %617 = vmatprep.subr.mxu0 0.0
    %618 = vmatpush2.msra.mxu0 0.0
    %619 = vmatprep.subr.mxu0 0.0
    %620 = vmatpush2.msra.mxu0 0.0
    %621 = vmatprep.subr.mxu0 0.0
    %622 = vmatpush2.msra.mxu0 0.0
    %623 = vmatprep.subr.mxu0 0.0
    %624 = vmatpush2.msra.mxu0 0.0
    %625 = vmatprep.subr.mxu0 0.0
    %626 = vmatpush2.msra.mxu0 0.0
    %627 = vmatprep.mubr.f32.mxu0 0.0
    %628 = vmatmul.mubr.f32.gmra.mxu0 %v561
    %v629 = vpop.f32.mrf.mxu0
    %v630 = vadd.f32 %v556, %v629
    %v631 = vpop.f32.mrf.mxu0
    %632 = vdwg.mxu0
    %v633 = vld [vmem:[%s11] sm:$0x1]
    %v635 = vlaneseq
    %v636 = vshrl.u32 %v635, 7
    %v637 = vsub.s32 0, %v636
    %v638 = vrot.slane %v633, %v637
    %v640 = vadd.f32 %v630, %v638
    %v641 = vmax.f32 %v640, 0.0
    %v642 = vld [vmem:[%s12] sm:$0xff]
    %v643 = vld [vmem:[%s12 + $0x8] sm:$0xff]
    %v644 = vld [vmem:[%s12 + $0x10] sm:$0xff]
    %v645 = vld [vmem:[%s12 + $0x18] sm:$0xff]
    %v646 = vld [vmem:[#allocation13] sm:$0x1]
    %v648 = vlaneseq
    %v649 = vshrl.u32 %v648, 7
    %v650 = vsub.s32 0, %v649
    %v651 = vrot.slane %v646, %v650
    %v654 = vsel %vm238, %v641, 0
    %656 = vmatprep.subr.mxu0 0.0
    %657 = vmatpush1.msra.mxu0 0.0
    %658 = vmatprep.subr.mxu0 0.0
    %659 = vmatpush1.msra.mxu0 0.0
    %660 = vmatprep.subr.mxu0 0.0
    %661 = vmatpush1.msra.mxu0 0.0
    %662 = vmatprep.subr.mxu0 0.0
    %663 = vmatpush1.msra.mxu0 0.0
    %664 = vmatprep.subr.mxu0 0.0
    %665 = vmatpush1.msra.mxu0 0.0
    %666 = vmatprep.subr.mxu0 0.0
    %667 = vmatpush1.msra.mxu0 0.0
    %668 = vmatprep.subr.mxu0 0.0
    %669 = vmatpush1.msra.mxu0 0.0
    %670 = vmatprep.subr.mxu0 0.0
    %671 = vmatpush1.msra.mxu0 0.0
    %672 = vmatprep.subr.mxu0 0.0
    %673 = vmatpush1.msra.mxu0 0.0
    %674 = vmatprep.subr.mxu0 0.0
    %675 = vmatpush1.msra.mxu0 0.0
    %676 = vmatprep.subr.mxu0 0.0
    %677 = vmatpush1.msra.mxu0 0.0
    %678 = vmatprep.subr.mxu0 0.0
    %679 = vmatpush1.msra.mxu0 0.0
    %680 = vmatprep.subr.mxu0 0.0
    %681 = vmatpush1.msra.mxu0 %v645
    %682 = vmatprep.subr.mxu0 0.0
    %683 = vmatpush1.msra.mxu0 %v644
    %684 = vmatprep.subr.mxu0 0.0
    %685 = vmatpush1.msra.mxu0 %v643
    %686 = vmatprep.subr.mxu0 0.0
    %687 = vmatpush1.msra.mxu0 %v642
    %688 = vmatprep.subr.mxu0 0.0
    %689 = vmatpush2.msra.mxu0 0.0
    %690 = vmatprep.subr.mxu0 0.0
    %691 = vmatpush2.msra.mxu0 0.0
    %692 = vmatprep.subr.mxu0 0.0
    %693 = vmatpush2.msra.mxu0 0.0
    %694 = vmatprep.subr.mxu0 0.0
    %695 = vmatpush2.msra.mxu0 0.0
    %696 = vmatprep.subr.mxu0 0.0
    %697 = vmatpush2.msra.mxu0 0.0
    %698 = vmatprep.subr.mxu0 0.0
    %699 = vmatpush2.msra.mxu0 0.0
    %700 = vmatprep.subr.mxu0 0.0
    %701 = vmatpush2.msra.mxu0 0.0
    %702 = vmatprep.subr.mxu0 0.0
    %703 = vmatpush2.msra.mxu0 0.0
    %704 = vmatprep.subr.mxu0 0.0
    %705 = vmatpush2.msra.mxu0 0.0
    %706 = vmatprep.subr.mxu0 0.0
    %707 = vmatpush2.msra.mxu0 0.0
    %708 = vmatprep.subr.mxu0 0.0
    %709 = vmatpush2.msra.mxu0 0.0
    %710 = vmatprep.subr.mxu0 0.0
    %711 = vmatpush2.msra.mxu0 0.0
    %712 = vmatprep.subr.mxu0 0.0
    %713 = vmatpush2.msra.mxu0 0.0
    %714 = vmatprep.subr.mxu0 0.0
    %715 = vmatpush2.msra.mxu0 0.0
    %716 = vmatprep.subr.mxu0 0.0
    %717 = vmatpush2.msra.mxu0 0.0
    %718 = vmatprep.subr.mxu0 0.0
    %719 = vmatpush2.msra.mxu0 0.0
    %720 = vmatprep.mubr.f32.mxu0 0.0
    %721 = vmatmul.mubr.f32.gmra.mxu0 %v654
    %v722 = vpop.f32.mrf.mxu0
    %v723 = vadd.f32 %v651, %v722
    %v724 = vpop.f32.mrf.mxu0
    %725 = vdwg.mxu0
    %v726 = vmax.f32 %v723, 0.0
    %v727 = vld [vmem:[%s14] sm:$0xff]
    %v728 = vld [vmem:[%s14 + $0x8] sm:$0xff]
    %v729 = vld [vmem:[%s14 + $0x10] sm:$0xff]
    %v730 = vld [vmem:[%s14 + $0x18] sm:$0xff]
    %v731 = vld [vmem:[%s15] sm:$0x1]
    %v733 = vlaneseq
    %v734 = vshrl.u32 %v733, 7
    %v735 = vsub.s32 0, %v734
    %v736 = vrot.slane %v731, %v735
    %v739 = vsel %vm238, %v726, 0
    %741 = vmatprep.subr.mxu0 0.0
    %742 = vmatpush1.msra.mxu0 0.0
    %743 = vmatprep.subr.mxu0 0.0
    %744 = vmatpush1.msra.mxu0 0.0
    %745 = vmatprep.subr.mxu0 0.0
    %746 = vmatpush1.msra.mxu0 0.0
    %747 = vmatprep.subr.mxu0 0.0
    %748 = vmatpush1.msra.mxu0 0.0
    %749 = vmatprep.subr.mxu0 0.0
    %750 = vmatpush1.msra.mxu0 0.0
    %751 = vmatprep.subr.mxu0 0.0
    %752 = vmatpush1.msra.mxu0 0.0
    %753 = vmatprep.subr.mxu0 0.0
    %754 = vmatpush1.msra.mxu0 0.0
    %755 = vmatprep.subr.mxu0 0.0
    %756 = vmatpush1.msra.mxu0 0.0
    %757 = vmatprep.subr.mxu0 0.0
    %758 = vmatpush1.msra.mxu0 0.0
    %759 = vmatprep.subr.mxu0 0.0
    %760 = vmatpush1.msra.mxu0 0.0
    %761 = vmatprep.subr.mxu0 0.0
    %762 = vmatpush1.msra.mxu0 0.0
    %763 = vmatprep.subr.mxu0 0.0
    %764 = vmatpush1.msra.mxu0 0.0
    %765 = vmatprep.subr.mxu0 0.0
    %766 = vmatpush1.msra.mxu0 %v730
    %767 = vmatprep.subr.mxu0 0.0
    %768 = vmatpush1.msra.mxu0 %v729
    %769 = vmatprep.subr.mxu0 0.0
    %770 = vmatpush1.msra.mxu0 %v728
    %771 = vmatprep.subr.mxu0 0.0
    %772 = vmatpush1.msra.mxu0 %v727
    %773 = vmatprep.subr.mxu0 0.0
    %774 = vmatpush2.msra.mxu0 0.0
    %775 = vmatprep.subr.mxu0 0.0
    %776 = vmatpush2.msra.mxu0 0.0
    %777 = vmatprep.subr.mxu0 0.0
    %778 = vmatpush2.msra.mxu0 0.0
    %779 = vmatprep.subr.mxu0 0.0
    %780 = vmatpush2.msra.mxu0 0.0
    %781 = vmatprep.subr.mxu0 0.0
    %782 = vmatpush2.msra.mxu0 0.0
    %783 = vmatprep.subr.mxu0 0.0
    %784 = vmatpush2.msra.mxu0 0.0
    %785 = vmatprep.subr.mxu0 0.0
    %786 = vmatpush2.msra.mxu0 0.0
    %787 = vmatprep.subr.mxu0 0.0
    %788 = vmatpush2.msra.mxu0 0.0
    %789 = vmatprep.subr.mxu0 0.0
    %790 = vmatpush2.msra.mxu0 0.0
    %791 = vmatprep.subr.mxu0 0.0
    %792 = vmatpush2.msra.mxu0 0.0
    %793 = vmatprep.subr.mxu0 0.0
    %794 = vmatpush2.msra.mxu0 0.0
    %795 = vmatprep.subr.mxu0 0.0
    %796 = vmatpush2.msra.mxu0 0.0
    %797 = vmatprep.subr.mxu0 0.0
    %798 = vmatpush2.msra.mxu0 0.0
    %799 = vmatprep.subr.mxu0 0.0
    %800 = vmatpush2.msra.mxu0 0.0
    %801 = vmatprep.subr.mxu0 0.0
    %802 = vmatpush2.msra.mxu0 0.0
    %803 = vmatprep.subr.mxu0 0.0
    %804 = vmatpush2.msra.mxu0 0.0
    %805 = vmatprep.mubr.f32.mxu0 0.0
    %806 = vmatmul.mubr.f32.gmra.mxu0 %v739
    %v807 = vpop.f32.mrf.mxu0
    %v808 = vadd.f32 %v736, %v807
    %v809 = vpop.f32.mrf.mxu0
    %810 = vdwg.mxu0
    %v811 = vtanh.pop %v808
    %vm812 = vcmask 48128
    %813 = vst.msk [vmem:[#allocation14] sm:$0xff] %vm812, %v811
    // Predicated region
    $region94: #{conditional_ae_forward.1} parent=1 // pred_check
      _
    $region95: #{conditional_ae_forward.1} parent=1 // pred_check_branch
      %815 = sbr.rel (0) target = $region97
    $region96: #{conditional_ae_forward.1} parent=1 // pred_region
      %s817 = ssub.s32 128, 128
      %818 = vsyncadd [#allocation4], %s817
      %s820 = sshll.u32 [#allocation14], 4
      %s821 = int_to_ptr.vmem [resolvable:$true] %s820
      %823 = dma.vmem_to_hbm [thread:$0]  %s821, 128, %s16, [#allocation4]
    $region97: #{conditional_ae_forward.1} parent=1 // pred_fallthru
      _
    // Predicated region
    $region98: #{conditional_ae_forward.1} parent=1 // pred_check
      _
    $region99: #{conditional_ae_forward.1} parent=1 // pred_check_branch
      %825 = sbr.rel (0) target = $region101
    $region100: #{conditional_ae_forward.1} parent=1 // pred_region
      %826 = dma.done [#allocation4], 128
    $region101: #{conditional_ae_forward.1} parent=1 // pred_fallthru
      _
    %827 = vsyncpa [#allocation3], 1
    %828 = vsyncpa [#allocation6], 1
    %829 = vsyncpa [#allocation9], 1
    %830 = vsyncpa [#allocation12], 1
    %831 = vsyncpa [#allocation4], 1

</llo_original>
